<compile_context>
chip_gen: v7x
topology: tpu7x:2x2x1
jax: 0.10.0
libtpu: 0.0.40
codegen_flags: <defaults>
</compile_context>

<pallas_src>
import functools

import jax
import jax.numpy as jnp
from jax import lax
from jax.experimental import pallas as pl
from jax.experimental.pallas import tpu as pltpu


def _round_up(x: int, m: int) -> int:
    return ((x + m - 1) // m) * m


def critic_kernel(x_ref, w1_ref, b1_ref, w2_ref, b2_ref, w3_ref, b3_ref, o_ref):
    # x_ref: (TB, n_obs) obs tile in native layout (batch on sublanes).
    # Contract over n_obs against W1^T (H, n_obs) so h1 comes out (H, TB):
    # batch lands on the lane axis with no wrapper transpose.
    x = x_ref[...]
    h1 = lax.dot_general(
        w1_ref[...], x,
        dimension_numbers=(((1,), (1,)), ((), ())),
        preferred_element_type=jnp.float32,
    ) + b1_ref[...]
    h1 = jnp.maximum(h1, 0.0)                                     # (H, TB) f32

    # Second layer: cast h1 to the matmul dtype (no-op in the f32 path).
    h2 = jnp.dot(
        w2_ref[...], h1.astype(w2_ref.dtype),
        preferred_element_type=jnp.float32,
    ) + b2_ref[...]
    h2 = jnp.maximum(h2, 0.0)                                     # (H, TB)
    h = h1 + h2                                                   # residual

    # Value head: an (H,1) matmul would waste the MXU column dimension; use a
    # VPU multiply + sublane reduce (free VLIW slots).  Result (1, TB) is
    # lane-dense.
    o_ref[...] = jnp.sum(h * w3_ref[...], axis=0, keepdims=True) + b3_ref[0]


@functools.partial(jax.jit, static_argnames=("block_b", "use_bf16"))
def critic_forward(obs, w1, b1, w2, b2, w3, b3, *, block_b: int = 2048,
                   use_bf16: bool = False):
    """obs: (B, n_obs).  Weights in (in, out) layout, biases (1, out)."""
    B, n_obs = obs.shape
    H = w1.shape[1]

    # Batch tile (lane axis of the output / MXU N dimension):
    #  * B <= 128: a single full-array block (block dims == array dims, so the
    #    (8,128) divisibility rule is trivially satisfied).
    #  * B  > 128: multiple of 128, capped so there are >= 2 grid steps
    #    (second v7x TensorCore gets work) and large enough (default 2048)
    #    that per-step pipeline overhead and DMA setup are amortized.
    if B <= 128:
        tb = B
    else:
        tb = min(block_b, _round_up(pl.cdiv(B, 2), 128))
    num_tiles = pl.cdiv(B, tb)

    mm_dtype = jnp.bfloat16 if use_bf16 else obs.dtype
    obs_mm = obs.astype(mm_dtype)             # caller can pass bf16 directly
    # Weights as (out, in) so the kernel computes W @ x; biases as (out, 1).
    w1_t = w1.T.astype(mm_dtype)              # (H, n_obs)  resident
    w2_t = w2.T.astype(mm_dtype)              # (H, H)      resident
    b1_c = b1.reshape(H, 1).astype(jnp.float32)
    b2_c = b2.reshape(H, 1).astype(jnp.float32)
    w3_c = w3.reshape(H, 1).astype(jnp.float32)
    b3_s = b3.reshape(1).astype(jnp.float32)  # scalar -> SMEM

    const = lambda shape: pl.BlockSpec(shape, lambda i: (0, 0))    # resident

    elt = 2 if use_bf16 else 4
    flops = 2 * B * (n_obs * H + H * H + H)
    bytes_accessed = (B * n_obs * elt                 # obs in
                      + B * 4                         # values out
                      + (H * n_obs + H * H) * elt     # W1, W2
                      + (3 * H + 1) * 4)              # b1, b2, w3, b3

    out = pl.pallas_call(
        critic_kernel,
        out_shape=jax.ShapeDtypeStruct((1, B), jnp.float32),
        grid=(num_tiles,),
        in_specs=[
            pl.BlockSpec((tb, n_obs), lambda i: (i, 0)),          # obs tile
            const((H, n_obs)),                                    # W1^T
            const((H, 1)),                                        # b1
            const((H, H)),                                        # W2^T
            const((H, 1)),                                        # b2
            const((H, 1)),                                        # w3 column
            pl.BlockSpec(memory_space=pltpu.MemorySpace.SMEM),    # b3 scalar
        ],
        out_specs=pl.BlockSpec((1, tb), lambda i: (0, i)),
        compiler_params=pltpu.CompilerParams(
            dimension_semantics=("parallel",),     # batch grid -> 2 TCs on v7x
            vmem_limit_bytes=32 * 1024 * 1024,
        ),
        cost_estimate=pl.CostEstimate(
            flops=flops, transcendentals=0, bytes_accessed=bytes_accessed),
    )(obs_mm, w1_t, b1_c, w2_t, b2_c, w3_c, b3_s)

    # (1, B) lane-dense row -> PyTorch-style (B, 1) column (pure reshape).
    return out.reshape(B, 1)


def init_params(key, n_obs, hidden_dim):
    """Deterministic init mimicking nn.Linear's U(-1/sqrt(fan_in), 1/sqrt(fan_in))."""
    ks = jax.random.split(key, 6)

    def linear(kw, kb, fan_in, fan_out):
        bound = 1.0 / jnp.sqrt(jnp.float32(fan_in))
        w = jax.random.uniform(kw, (fan_in, fan_out), jnp.float32, -bound, bound)
        b = jax.random.uniform(kb, (1, fan_out), jnp.float32, -bound, bound)
        return w, b

    w1, b1 = linear(ks[0], ks[1], n_obs, hidden_dim)
    w2, b2 = linear(ks[2], ks[3], hidden_dim, hidden_dim)
    w3, b3 = linear(ks[4], ks[5], hidden_dim, 1)
    return w1, b1, w2, b2, w3, b3


def reference_forward(obs, w1, b1, w2, b2, w3, b3):
    h1 = jnp.maximum(obs @ w1 + b1, 0.0)
    h2 = jnp.maximum(h1 @ w2 + b2, 0.0)
    return (h1 + h2) @ w3 + b3


if __name__ == "__main__":
    n_obs, hidden_dim = 16, 32
    key = jax.random.PRNGKey(0)
    k_obs, k_obs2, k_params = jax.random.split(key, 3)
    params = init_params(k_params, n_obs, hidden_dim)

    # Small batch: single full-array block.
    B = 8
    obs = jax.random.normal(k_obs, (B, n_obs), dtype=jnp.float32)
    out = jax.block_until_ready(critic_forward(obs, *params))
    ref = reference_forward(obs, *params)
    assert out.shape == (B, 1), out.shape
    assert jnp.allclose(out, ref, atol=1e-4, rtol=1e-4), "mismatch vs JAX reference (B=8)"

    # Multi-tile path: B=640 is not a multiple of the tile -> 2 grid steps with
    # a masked partial last block (no wrapper pad), one tile per v7x core.
    B2 = 640
    obs2 = jax.random.normal(k_obs2, (B2, n_obs), dtype=jnp.float32)
    out2 = jax.block_until_ready(critic_forward(obs2, *params))
    ref2 = reference_forward(obs2, *params)
    assert out2.shape == (B2, 1), out2.shape
    assert jnp.allclose(out2, ref2, atol=1e-4, rtol=1e-4), "mismatch vs JAX reference (B=640)"

    # Optional bf16 input path (halves obs HBM stream on v6e/v7x); loose smoke
    # tolerance since inputs/weights are rounded to bf16.
    out2_bf16 = jax.block_until_ready(critic_forward(obs2, *params, use_bf16=True))
    assert out2_bf16.shape == (B2, 1), out2_bf16.shape
    assert jnp.allclose(out2_bf16, ref2, atol=1e-1, rtol=1e-1), "bf16 path mismatch"

    print("KERNEL_OK")
</pallas_src>

<mosaic_0001>
module attributes {stable_mosaic.version = 11 : i64} {
  func.func @critic_kernel(%arg0: i32, %arg1: memref<8x16xf32, #tpu.memory_space<vmem>>, %arg2: memref<32x16xf32, #tpu.memory_space<vmem>>, %arg3: memref<32x1xf32, #tpu.memory_space<vmem>>, %arg4: memref<32x32xf32, #tpu.memory_space<vmem>>, %arg5: memref<32x1xf32, #tpu.memory_space<vmem>>, %arg6: memref<32x1xf32, #tpu.memory_space<vmem>>, %arg7: memref<1xf32, #tpu.memory_space<smem>>, %arg8: memref<1x8xf32, #tpu.memory_space<vmem>>) attributes {dimension_semantics = [#tpu.dimension_semantics<parallel>], iteration_bounds = array<i64: 1>, scalar_prefetch = 0 : i64, scratch_operands = 0 : i64, tpu.core_type = #tpu.core_type<tc>, window_params = [{transform_indices = @transform_0, window_bounds = array<i64: 8, 16>}, {pipeline_mode = #tpu.pipeline_mode<synchronous>, transform_indices = @transform_1, window_bounds = array<i64: 32, 16>}, {pipeline_mode = #tpu.pipeline_mode<synchronous>, transform_indices = @transform_2, window_bounds = array<i64: 32, 1>}, {pipeline_mode = #tpu.pipeline_mode<synchronous>, transform_indices = @transform_3, window_bounds = array<i64: 32, 32>}, {pipeline_mode = #tpu.pipeline_mode<synchronous>, transform_indices = @transform_4, window_bounds = array<i64: 32, 1>}, {pipeline_mode = #tpu.pipeline_mode<synchronous>, transform_indices = @transform_5, window_bounds = array<i64: 32, 1>}, {transform_indices = @transform_6, window_bounds = array<i64: 1>}, {transform_indices = @transform_7, window_bounds = array<i64: 1, 8>}]} {
    %c0 = arith.constant 0 : index
    %c0_0 = arith.constant 0 : index
    %0 = vector.load %arg1[%c0, %c0_0] : memref<8x16xf32, #tpu.memory_space<vmem>>, vector<8x16xf32>
    %c0_1 = arith.constant 0 : index
    %c0_2 = arith.constant 0 : index
    %1 = vector.load %arg2[%c0_1, %c0_2] : memref<32x16xf32, #tpu.memory_space<vmem>>, vector<32x16xf32>
    %cst = arith.constant dense<0.000000e+00> : vector<32x8xf32>
    %2 = tpu.matmul %1, %0, %cst {dimension_numbers = #tpu.dot_dimension_numbers<[1], [1], [0], [0], [0, 0, 1, 0], [], []>} : vector<32x16xf32>, vector<8x16xf32>, vector<32x8xf32> -> vector<32x8xf32>
    %c0_3 = arith.constant 0 : index
    %c0_4 = arith.constant 0 : index
    %3 = vector.load %arg3[%c0_3, %c0_4] : memref<32x1xf32, #tpu.memory_space<vmem>>, vector<32x1xf32>
    %4 = vector.broadcast %3 : vector<32x1xf32> to vector<32x8xf32>
    %5 = arith.addf %2, %4 : vector<32x8xf32>
    %cst_5 = arith.constant 0.000000e+00 : f32
    %6 = vector.broadcast %cst_5 : f32 to vector<32x8xf32>
    %7 = arith.maximumf %5, %6 : vector<32x8xf32>
    %c0_6 = arith.constant 0 : index
    %c0_7 = arith.constant 0 : index
    %8 = vector.load %arg4[%c0_6, %c0_7] : memref<32x32xf32, #tpu.memory_space<vmem>>, vector<32x32xf32>
    %cst_8 = arith.constant dense<0.000000e+00> : vector<32x8xf32>
    %9 = tpu.matmul %8, %7, %cst_8 {dimension_numbers = #tpu.dot_dimension_numbers<[1], [0], [0], [1], [0, 0, 1, 1], [], []>} : vector<32x32xf32>, vector<32x8xf32>, vector<32x8xf32> -> vector<32x8xf32>
    %c0_9 = arith.constant 0 : index
    %c0_10 = arith.constant 0 : index
    %10 = vector.load %arg5[%c0_9, %c0_10] : memref<32x1xf32, #tpu.memory_space<vmem>>, vector<32x1xf32>
    %11 = vector.broadcast %10 : vector<32x1xf32> to vector<32x8xf32>
    %12 = arith.addf %9, %11 : vector<32x8xf32>
    %cst_11 = arith.constant 0.000000e+00 : f32
    %13 = vector.broadcast %cst_11 : f32 to vector<32x8xf32>
    %14 = arith.maximumf %12, %13 : vector<32x8xf32>
    %15 = arith.addf %7, %14 : vector<32x8xf32>
    %c0_12 = arith.constant 0 : index
    %c0_13 = arith.constant 0 : index
    %16 = vector.load %arg6[%c0_12, %c0_13] : memref<32x1xf32, #tpu.memory_space<vmem>>, vector<32x1xf32>
    %17 = vector.broadcast %16 : vector<32x1xf32> to vector<32x8xf32>
    %18 = arith.mulf %15, %17 : vector<32x8xf32>
    %cst_14 = arith.constant dense<0.000000e+00> : vector<8xf32>
    %19 = vector.multi_reduction <add>, %18, %cst_14 [0] : vector<32x8xf32> to vector<8xf32>
    %20 = vector.shape_cast %19 : vector<8xf32> to vector<1x8xf32>
    %c0_15 = arith.constant 0 : index
    %21 = memref.load %arg7[%c0_15] : memref<1xf32, #tpu.memory_space<smem>>
    %22 = vector.broadcast %21 : f32 to vector<1x8xf32>
    %23 = arith.addf %20, %22 : vector<1x8xf32>
    %c0_16 = arith.constant 0 : index
    %c0_17 = arith.constant 0 : index
    %24 = vector.load %arg8[%c0_16, %c0_17] : memref<1x8xf32, #tpu.memory_space<vmem>>, vector<1x8xf32>
    tpu.vector_store %arg8[%c0_16, %c0_17], %23 {strides = array<i32>} : memref<1x8xf32, #tpu.memory_space<vmem>>, vector<1x8xf32>,
    return
  }
  func.func @transform_0(%arg0: i32) -> (i32, i32) {
    %c0_i32 = arith.constant 0 : i32
    %c0_i32_0 = arith.constant 0 : i32
    return %arg0, %c0_i32 : i32, i32
  }
  func.func @transform_1(%arg0: i32) -> (i32, i32) {
    %c0_i32 = arith.constant 0 : i32
    %c0_i32_0 = arith.constant 0 : i32
    %c0_i32_1 = arith.constant 0 : i32
    return %c0_i32, %c0_i32_0 : i32, i32
  }
  func.func @transform_2(%arg0: i32) -> (i32, i32) {
    %c0_i32 = arith.constant 0 : i32
    %c0_i32_0 = arith.constant 0 : i32
    %c0_i32_1 = arith.constant 0 : i32
    return %c0_i32, %c0_i32_0 : i32, i32
  }
  func.func @transform_3(%arg0: i32) -> (i32, i32) {
    %c0_i32 = arith.constant 0 : i32
    %c0_i32_0 = arith.constant 0 : i32
    %c0_i32_1 = arith.constant 0 : i32
    return %c0_i32, %c0_i32_0 : i32, i32
  }
  func.func @transform_4(%arg0: i32) -> (i32, i32) {
    %c0_i32 = arith.constant 0 : i32
    %c0_i32_0 = arith.constant 0 : i32
    %c0_i32_1 = arith.constant 0 : i32
    return %c0_i32, %c0_i32_0 : i32, i32
  }
  func.func @transform_5(%arg0: i32) -> (i32, i32) {
    %c0_i32 = arith.constant 0 : i32
    %c0_i32_0 = arith.constant 0 : i32
    %c0_i32_1 = arith.constant 0 : i32
    return %c0_i32, %c0_i32_0 : i32, i32
  }
  func.func @transform_6(%arg0: i32) -> i32 {
    %c0_i32 = arith.constant 0 : i32
    %c0_i32_0 = arith.constant 0 : i32
    return %c0_i32 : i32
  }
  func.func @transform_7(%arg0: i32) -> (i32, i32) {
    %c0_i32 = arith.constant 0 : i32
    %c0_i32_0 = arith.constant 0 : i32
    return %c0_i32, %arg0 : i32, i32
  }
}

</mosaic_0001>

<llo_original>
// kernel: critic_forward.1
$region0: #{critic_forward.1}
  #allocation0 [shape = 'u32[]', space=smem, size = 0x4, offset = 0x4, fixed_abs, tag = 'smem constant byte address 0x4 - core index']
  #allocation1 [shape = 'u32[144,128]{1,0:T(1,128)}', space=vmem, size = 0x12000, scoped, tag = 'internal scratch']
  #allocation2 [shape = 'f32[1]{0:T(128)S(6)}', space=smem, size = 0x200, scoped, tag = 'scoped memory for critic_forward.1']
  %s0 = inlined_call_operand.vmem [shape: f32[8,16], index: 0, kind: input, shape index: {}]
  %s1 = inlined_call_operand.vmem [shape: f32[32,16], index: 1, kind: input, shape index: {}]
  %s2 = inlined_call_operand.vmem [shape: f32[32,1], index: 2, kind: input, shape index: {}]
  %s3 = inlined_call_operand.vmem [shape: f32[32,32], index: 3, kind: input, shape index: {}]
  %s4 = inlined_call_operand.vmem [shape: f32[32,1], index: 4, kind: input, shape index: {}]
  %s5 = inlined_call_operand.vmem [shape: f32[32,1], index: 5, kind: input, shape index: {}]
  %s6 = inlined_call_operand.<no memory space> [shape: f32[1], index: 6, kind: input, shape index: {}]
  %s7 = inlined_call_operand.hbm [shape: f32[1,8], index: 7, kind: output, shape index: {}]
  %s8 = sld [smem:[#allocation0]]
  $region38: #{critic_forward.1} parent=0
    _
  %s10 = ssub.s32 1, %s8
  %s11 = scalar_select 0, %s10, %s8
  %12 = sst [smem:[#allocation2]] %s6
  $region1: #{critic_forward.1} parent=0
    #allocation3 [shape = 'u8[512]{0}', space=vmem, size = 0x400, scoped, tag = 'output window, operand 0, single buffered']
    #allocation4 [shape = 's32[1]{0}', space=sflag, size = 0x4, scoped, tag = 'scoped memory for critic_forward.1']
    %13 = vsyncpa [#allocation4], 0
    // Predicated region
    $region2: #{critic_forward.1} parent=1 // pred_check
      _
    $region3: #{critic_forward.1} parent=1 // pred_check_branch
      %15 = sbr.rel (0) target = $region5
    $region4: #{critic_forward.1} parent=1 // pred_region
      _
    $region5: #{critic_forward.1} parent=1 // pred_fallthru
      _
    // Predicated region
    $region6: #{critic_forward.1} parent=1 // pred_check
      _
    $region7: #{critic_forward.1} parent=1 // pred_check_branch
      %17 = sbr.rel (0) target = $region9
    $region8: #{critic_forward.1} parent=1 // pred_region
      _
    $region9: #{critic_forward.1} parent=1 // pred_fallthru
      _
    // Predicated region
    $region10: #{critic_forward.1} parent=1 // pred_check
      _
    $region11: #{critic_forward.1} parent=1 // pred_check_branch
      %19 = sbr.rel (0) target = $region13
    $region12: #{critic_forward.1} parent=1 // pred_region
      _
    $region13: #{critic_forward.1} parent=1 // pred_fallthru
      _
    // Predicated region
    $region14: #{critic_forward.1} parent=1 // pred_check
      _
    $region15: #{critic_forward.1} parent=1 // pred_check_branch
      %21 = sbr.rel (0) target = $region17
    $region16: #{critic_forward.1} parent=1 // pred_region
      _
    $region17: #{critic_forward.1} parent=1 // pred_fallthru
      _
    // Predicated region
    $region18: #{critic_forward.1} parent=1 // pred_check
      _
    $region19: #{critic_forward.1} parent=1 // pred_check_branch
      %23 = sbr.rel (0) target = $region21
    $region20: #{critic_forward.1} parent=1 // pred_region
      _
    $region21: #{critic_forward.1} parent=1 // pred_fallthru
      _
    // Predicated region
    $region22: #{critic_forward.1} parent=1 // pred_check
      _
    $region23: #{critic_forward.1} parent=1 // pred_check_branch
      %25 = sbr.rel (0) target = $region25
    $region24: #{critic_forward.1} parent=1 // pred_region
      _
    $region25: #{critic_forward.1} parent=1 // pred_fallthru
      _
    // Predicated region
    $region26: #{critic_forward.1} parent=1 // pred_check
      _
    $region27: #{critic_forward.1} parent=1 // pred_check_branch
      %27 = sbr.rel (0) target = $region29
    $region28: #{critic_forward.1} parent=1 // pred_region
      _
    $region29: #{critic_forward.1} parent=1 // pred_fallthru
      _
    %v28 = vld [vmem:[%s0] sm:$0xff]
    %v29 = vld [vmem:[%s1] sm:$0xff]
    %v30 = vld [vmem:[%s1 + $0x8] sm:$0xff]
    %v31 = vld [vmem:[%s1 + $0x10] sm:$0xff]
    %v32 = vld [vmem:[%s1 + $0x18] sm:$0xff]
    %v33 = vld [vmem:[%s2] sm:$0xff]
    %v34 = vld [vmem:[%s2 + $0x8] sm:$0xff]
    %v35 = vld [vmem:[%s2 + $0x10] sm:$0xff]
    %v36 = vld [vmem:[%s2 + $0x18] sm:$0xff]
    %38 = vset.pattern.permute.xlu0 0
    %39 = vperm.xlu0 %38, %v33
    %v40 = vpop.permute.xlu0 %39
    %43 = vset.pattern.permute.xlu0 0
    %44 = vperm.xlu0 %43, %v34
    %v45 = vpop.permute.xlu0 %44
    %48 = vset.pattern.permute.xlu0 0
    %49 = vperm.xlu0 %48, %v35
    %v50 = vpop.permute.xlu0 %49
    %53 = vset.pattern.permute.xlu0 0
    %54 = vperm.xlu0 %53, %v36
    %v55 = vpop.permute.xlu0 %54
    %vm57 = vcmask 130048
    %v59 = vsel %vm57, %v29, 0
    %v62 = vsel %vm57, %v30, 0
    %v65 = vsel %vm57, %v31, 0
    %v68 = vsel %vm57, %v32, 0
    %v71 = vsel %vm57, %v28, 0
    %73 = vmatprep.subr.mxu0 0.0
    %74 = vmatpush1.xpose.msra.mxu0 %v71
    %75 = vmatprep.subr.mxu0 0.0
    %76 = vmatpush1.xpose.msra.mxu0 0.0
    %77 = vmatprep.subr.mxu0 0.0
    %78 = vmatpush1.xpose.msra.mxu0 0.0
    %79 = vmatprep.subr.mxu0 0.0
    %80 = vmatpush1.xpose.msra.mxu0 0.0
    %81 = vmatprep.subr.mxu0 0.0
    %82 = vmatpush1.xpose.msra.mxu0 0.0
    %83 = vmatprep.subr.mxu0 0.0
    %84 = vmatpush1.xpose.msra.mxu0 0.0
    %85 = vmatprep.subr.mxu0 0.0
    %86 = vmatpush1.xpose.msra.mxu0 0.0
    %87 = vmatprep.subr.mxu0 0.0
    %88 = vmatpush1.xpose.msra.mxu0 0.0
    %89 = vmatprep.subr.mxu0 0.0
    %90 = vmatpush1.xpose.msra.mxu0 0.0
    %91 = vmatprep.subr.mxu0 0.0
    %92 = vmatpush1.xpose.msra.mxu0 0.0
    %93 = vmatprep.subr.mxu0 0.0
    %94 = vmatpush1.xpose.msra.mxu0 0.0
    %95 = vmatprep.subr.mxu0 0.0
    %96 = vmatpush1.xpose.msra.mxu0 0.0
    %97 = vmatprep.subr.mxu0 0.0
    %98 = vmatpush1.xpose.msra.mxu0 0.0
    %99 = vmatprep.subr.mxu0 0.0
    %100 = vmatpush1.xpose.msra.mxu0 0.0
    %101 = vmatprep.subr.mxu0 0.0
    %102 = vmatpush1.xpose.msra.mxu0 0.0
    %103 = vmatprep.subr.mxu0 0.0
    %104 = vmatpush1.xpose.msra.mxu0 0.0
    %105 = vmatprep.subr.mxu0 0.0
    %106 = vmatpush1.xpose.msra.mxu0 0.0
    %107 = vmatprep.subr.mxu0 0.0
    %108 = vmatpush1.xpose.msra.mxu0 0.0
    %109 = vmatprep.subr.mxu0 0.0
    %110 = vmatpush1.xpose.msra.mxu0 0.0
    %111 = vmatprep.subr.mxu0 0.0
    %112 = vmatpush1.xpose.msra.mxu0 0.0
    %113 = vmatprep.subr.mxu0 0.0
    %114 = vmatpush1.xpose.msra.mxu0 0.0
    %115 = vmatprep.subr.mxu0 0.0
    %116 = vmatpush1.xpose.msra.mxu0 0.0
    %117 = vmatprep.subr.mxu0 0.0
    %118 = vmatpush1.xpose.msra.mxu0 0.0
    %119 = vmatprep.subr.mxu0 0.0
    %120 = vmatpush1.xpose.msra.mxu0 0.0
    %121 = vmatprep.subr.mxu0 0.0
    %122 = vmatpush1.xpose.msra.mxu0 0.0
    %123 = vmatprep.subr.mxu0 0.0
    %124 = vmatpush1.xpose.msra.mxu0 0.0
    %125 = vmatprep.subr.mxu0 0.0
    %126 = vmatpush1.xpose.msra.mxu0 0.0
    %127 = vmatprep.subr.mxu0 0.0
    %128 = vmatpush1.xpose.msra.mxu0 0.0
    %129 = vmatprep.subr.mxu0 0.0
    %130 = vmatpush1.xpose.msra.mxu0 0.0
    %131 = vmatprep.subr.mxu0 0.0
    %132 = vmatpush1.xpose.msra.mxu0 0.0
    %133 = vmatprep.subr.mxu0 0.0
    %134 = vmatpush1.xpose.msra.mxu0 0.0
    %135 = vmatprep.subr.mxu0 0.0
    %136 = vmatpush1.xpose.msra.mxu0 0.0
    %137 = vmatprep.mubr.f32.mxu0 0.0
    %138 = vmatmul.mubr.f32.gmra.mrb[0].mxu0 %v59
    %v139 = vpop.f32.mrb[0].mxu0
    %v140 = vadd.f32 %v40, %v139
    %v141 = vpop.f32.mrb[0].mxu0
    %142 = vmatprep.mubr.f32.mxu0 0.0
    %143 = vmatmul.mubr.f32.gmra.mrb[0].mxu0 %v62
    %v144 = vpop.f32.mrb[0].mxu0
    %v145 = vadd.f32 %v45, %v144
    %v146 = vpop.f32.mrb[0].mxu0
    %147 = vmatprep.mubr.f32.mxu0 0.0
    %148 = vmatmul.mubr.f32.gmra.mrb[0].mxu0 %v65
    %v149 = vpop.f32.mrb[0].mxu0
    %v150 = vadd.f32 %v50, %v149
    %v151 = vpop.f32.mrb[0].mxu0
    %152 = vmatprep.mubr.f32.mxu0 0.0
    %153 = vmatmul.mubr.f32.gmra.mrb[0].mxu0 %v68
    %v154 = vpop.f32.mrb[0].mxu0
    %v155 = vadd.f32 %v55, %v154
    %v156 = vpop.f32.mrb[0].mxu0
    %157 = vdwg.mxu0
    %v158 = vmax.f32 %v140, 0.0
    %v159 = vmax.f32 %v145, 0.0
    %v160 = vmax.f32 %v150, 0.0
    %v161 = vmax.f32 %v155, 0.0
    %v162 = vld [vmem:[%s3] sm:$0xff]
    %v163 = vld [vmem:[%s3 + $0x8] sm:$0xff]
    %v164 = vld [vmem:[%s3 + $0x10] sm:$0xff]
    %v165 = vld [vmem:[%s3 + $0x18] sm:$0xff]
    %v166 = vld [vmem:[%s4] sm:$0xff]
    %v167 = vld [vmem:[%s4 + $0x8] sm:$0xff]
    %v168 = vld [vmem:[%s4 + $0x10] sm:$0xff]
    %v169 = vld [vmem:[%s4 + $0x18] sm:$0xff]
    %171 = vset.pattern.permute.xlu0 0
    %172 = vperm.xlu0 %171, %v166
    %v173 = vpop.permute.xlu0 %172
    %176 = vset.pattern.permute.xlu0 0
    %177 = vperm.xlu0 %176, %v167
    %v178 = vpop.permute.xlu0 %177
    %181 = vset.pattern.permute.xlu0 0
    %182 = vperm.xlu0 %181, %v168
    %v183 = vpop.permute.xlu0 %182
    %186 = vset.pattern.permute.xlu0 0
    %187 = vperm.xlu0 %186, %v169
    %v188 = vpop.permute.xlu0 %187
    %vm190 = vcmask 261120
    %v192 = vsel %vm190, %v162, 0
    %v195 = vsel %vm190, %v163, 0
    %v198 = vsel %vm190, %v164, 0
    %v201 = vsel %vm190, %v165, 0
    %203 = vmatprep.subr.mxu0 0.0
    %204 = vmatpush1.msra.mxu0 %v158
    %205 = vmatprep.subr.mxu0 0.0
    %206 = vmatpush1.msra.mxu0 %v159
    %207 = vmatprep.subr.mxu0 0.0
    %208 = vmatpush1.msra.mxu0 %v160
    %209 = vmatprep.subr.mxu0 0.0
    %210 = vmatpush1.msra.mxu0 %v161
    %211 = vmatprep.subr.mxu0 0.0
    %212 = vmatpush1.msra.mxu0 0.0
    %213 = vmatprep.subr.mxu0 0.0
    %214 = vmatpush1.msra.mxu0 0.0
    %215 = vmatprep.subr.mxu0 0.0
    %216 = vmatpush1.msra.mxu0 0.0
    %217 = vmatprep.subr.mxu0 0.0
    %218 = vmatpush1.msra.mxu0 0.0
    %219 = vmatprep.subr.mxu0 0.0
    %220 = vmatpush1.msra.mxu0 0.0
    %221 = vmatprep.subr.mxu0 0.0
    %222 = vmatpush1.msra.mxu0 0.0
    %223 = vmatprep.subr.mxu0 0.0
    %224 = vmatpush1.msra.mxu0 0.0
    %225 = vmatprep.subr.mxu0 0.0
    %226 = vmatpush1.msra.mxu0 0.0
    %227 = vmatprep.subr.mxu0 0.0
    %228 = vmatpush1.msra.mxu0 0.0
    %229 = vmatprep.subr.mxu0 0.0
    %230 = vmatpush1.msra.mxu0 0.0
    %231 = vmatprep.subr.mxu0 0.0
    %232 = vmatpush1.msra.mxu0 0.0
    %233 = vmatprep.subr.mxu0 0.0
    %234 = vmatpush1.msra.mxu0 0.0
    %235 = vmatprep.subr.mxu0 0.0
    %236 = vmatpush1.msra.mxu0 0.0
    %237 = vmatprep.subr.mxu0 0.0
    %238 = vmatpush1.msra.mxu0 0.0
    %239 = vmatprep.subr.mxu0 0.0
    %240 = vmatpush1.msra.mxu0 0.0
    %241 = vmatprep.subr.mxu0 0.0
    %242 = vmatpush1.msra.mxu0 0.0
    %243 = vmatprep.subr.mxu0 0.0
    %244 = vmatpush1.msra.mxu0 0.0
    %245 = vmatprep.subr.mxu0 0.0
    %246 = vmatpush1.msra.mxu0 0.0
    %247 = vmatprep.subr.mxu0 0.0
    %248 = vmatpush1.msra.mxu0 0.0
    %249 = vmatprep.subr.mxu0 0.0
    %250 = vmatpush1.msra.mxu0 0.0
    %251 = vmatprep.subr.mxu0 0.0
    %252 = vmatpush1.msra.mxu0 0.0
    %253 = vmatprep.subr.mxu0 0.0
    %254 = vmatpush1.msra.mxu0 0.0
    %255 = vmatprep.subr.mxu0 0.0
    %256 = vmatpush1.msra.mxu0 0.0
    %257 = vmatprep.subr.mxu0 0.0
    %258 = vmatpush1.msra.mxu0 0.0
    %259 = vmatprep.subr.mxu0 0.0
    %260 = vmatpush1.msra.mxu0 0.0
    %261 = vmatprep.subr.mxu0 0.0
    %262 = vmatpush1.msra.mxu0 0.0
    %263 = vmatprep.subr.mxu0 0.0
    %264 = vmatpush1.msra.mxu0 0.0
    %265 = vmatprep.subr.mxu0 0.0
    %266 = vmatpush1.msra.mxu0 0.0
    %267 = vmatprep.mubr.f32.mxu0 0.0
    %268 = vmatmul.mubr.f32.gmra.mrb[0].mxu0 %v192
    %v269 = vpop.f32.mrb[0].mxu0
    %v270 = vadd.f32 %v173, %v269
    %v271 = vpop.f32.mrb[0].mxu0
    %272 = vmatprep.mubr.f32.mxu0 0.0
    %273 = vmatmul.mubr.f32.gmra.mrb[0].mxu0 %v195
    %v274 = vpop.f32.mrb[0].mxu0
    %v275 = vadd.f32 %v178, %v274
    %v276 = vpop.f32.mrb[0].mxu0
    %277 = vmatprep.mubr.f32.mxu0 0.0
    %278 = vmatmul.mubr.f32.gmra.mrb[0].mxu0 %v198
    %v279 = vpop.f32.mrb[0].mxu0
    %v280 = vadd.f32 %v183, %v279
    %v281 = vpop.f32.mrb[0].mxu0
    %282 = vmatprep.mubr.f32.mxu0 0.0
    %283 = vmatmul.mubr.f32.gmra.mrb[0].mxu0 %v201
    %v284 = vpop.f32.mrb[0].mxu0
    %v285 = vadd.f32 %v188, %v284
    %v286 = vpop.f32.mrb[0].mxu0
    %287 = vdwg.mxu0
    %v288 = vmax.f32 %v270, 0.0
    %v289 = vmax.f32 %v275, 0.0
    %v290 = vmax.f32 %v280, 0.0
    %v291 = vmax.f32 %v285, 0.0
    %v292 = vadd.f32 %v158, %v288
    %v293 = vadd.f32 %v159, %v289
    %v294 = vadd.f32 %v160, %v290
    %v295 = vadd.f32 %v161, %v291
    %v296 = vld [vmem:[%s5] sm:$0xff]
    %v297 = vld [vmem:[%s5 + $0x8] sm:$0xff]
    %v298 = vld [vmem:[%s5 + $0x10] sm:$0xff]
    %v299 = vld [vmem:[%s5 + $0x18] sm:$0xff]
    %301 = vset.pattern.permute.xlu0 0
    %302 = vperm.xlu0 %301, %v296
    %v303 = vpop.permute.xlu0 %302
    %306 = vset.pattern.permute.xlu0 0
    %307 = vperm.xlu0 %306, %v297
    %v308 = vpop.permute.xlu0 %307
    %311 = vset.pattern.permute.xlu0 0
    %312 = vperm.xlu0 %311, %v298
    %v313 = vpop.permute.xlu0 %312
    %316 = vset.pattern.permute.xlu0 0
    %317 = vperm.xlu0 %316, %v299
    %v318 = vpop.permute.xlu0 %317
    %v320 = vmul.f32 %v292, %v303
    %v321 = vmul.f32 %v293, %v308
    %v322 = vmul.f32 %v294, %v313
    %v323 = vmul.f32 %v295, %v318
    %vm324 = vcmask 64512
    %v325 = vsel %vm324, %v320, 0.0
    %v326 = vsel %vm324, %v321, 0.0
    %v327 = vadd.f32 %v325, %v326
    %v328 = vsel %vm324, %v322, 0.0
    %v329 = vadd.f32 %v327, %v328
    %v330 = vsel %vm324, %v323, 0.0
    %v331 = vadd.f32 %v329, %v330
    %v332 = vrot.slane %v331, 4
    %v333 = vadd.f32 %v331, %v332
    %v334 = vrot.slane %v333, 2
    %v335 = vadd.f32 %v333, %v334
    %v336 = vrot.slane %v335, 1
    %v337 = vadd.f32 %v335, %v336
    %s338 = sld [smem:[#allocation2]]
    %v339 = vstv %s338
    %v340 = vadd.f32 %v337, %v339
    %vm341 = vcmask 57344
    %342 = vst.msk [vmem:[#allocation3] sm:$0x1] %vm341, %v340
    // Predicated region
    $region30: #{critic_forward.1} parent=1 // pred_check
      _
    $region31: #{critic_forward.1} parent=1 // pred_check_branch
      %344 = sbr.rel (0) target = $region33
    $region32: #{critic_forward.1} parent=1 // pred_region
      %s346 = ssub.s32 16, 16
      %347 = vsyncadd [#allocation4], %s346
      %s349 = sshll.u32 [#allocation3], 4
      %s350 = int_to_ptr.vmem [resolvable:$true] %s349
      %352 = dma.vmem_to_hbm [thread:$0]  %s350, 16, %s7, [#allocation4]
    $region33: #{critic_forward.1} parent=1 // pred_fallthru
      _
    // Predicated region
    $region34: #{critic_forward.1} parent=1 // pred_check
      _
    $region35: #{critic_forward.1} parent=1 // pred_check_branch
      %354 = sbr.rel (0) target = $region37
    $region36: #{critic_forward.1} parent=1 // pred_region
      %355 = dma.done [#allocation4], 16
    $region37: #{critic_forward.1} parent=1 // pred_fallthru
      _
    %356 = vsyncpa [#allocation4], 1

</llo_original>
